<compile_context>
chip_gen: v5e
topology: v5e:2x2
jax: 0.10.0
libtpu: 0.0.40
codegen_flags: <defaults>
</compile_context>

<pallas_src>
import jax
import jax.numpy as jnp
from jax.experimental import pallas as pl
from jax.experimental.pallas import tpu as pltpu


# Per-array, per-buffer VMEM block budget. With (1 input + 3 outputs) double
# buffered this is <= 32 MiB of pipeline buffers + headroom: fine on v5e/v6e
# (128 MiB VMEM) and under v7x's 64 MiB per-TensorCore VMEM.
_MAX_BLOCK_BYTES = 4 * 1024 * 1024
# Target at least this many total grid steps (DMA/compute overlap + megacore).
_MIN_GRID_STEPS = 4


def _cdiv(a, b):
    return -(-a // b)


def _round_up(x, m):
    return _cdiv(x, m) * m


def _sublane_pack(itemsize):
    # Second-minor VMEM tiling granularity: 8 for f32, 16 for bf16, 32 for i8.
    return max(8, 32 // itemsize)


# ----------------------------- kernels ------------------------------------ #

def _tmsu_head_kernel(x_ref, ev_ref, alpha_ref, pred_ref):
    # x_ref block: (b_n, C, t_rows, 128) dense layout, or (b_n, C, t_s) in the
    # fallback. In both cases the class axis is axis=1.
    x = x_ref[...].astype(jnp.float32)

    # evidence = softplus(x), numerically stable form (matches F.softplus).
    ev = jnp.maximum(x, 0.0) + jnp.log1p(jnp.exp(-jnp.abs(x)))
    ev_ref[...] = ev.astype(ev_ref.dtype)

    # alpha = evidence + 1, fused in-kernel (VPU add is free; saves HBM passes).
    alpha_ref[...] = (ev + 1.0).astype(alpha_ref.dtype)

    # backbone_pred = softmax over the class axis.
    m = jnp.max(x, axis=1, keepdims=True)
    e = jnp.exp(x - m)
    denom = jnp.sum(e, axis=1, keepdims=True)
    inv = pl.reciprocal(denom, approx=True)  # EUP slot, otherwise idle here
    pred_ref[...] = (e * inv).astype(pred_ref.dtype)


def _tmsu_evidence_kernel(x_ref, ev_ref):
    # Eval path: evidence only (1 HBM read + 1 HBM write).
    x = x_ref[...].astype(jnp.float32)
    ev = jnp.maximum(x, 0.0) + jnp.log1p(jnp.exp(-jnp.abs(x)))
    ev_ref[...] = ev.astype(ev_ref.dtype)


# ----------------------------- tiling -------------------------------------- #

def _choose_tiling_rows(N, C, R, itemsize, sub):
    """Tiling for the dense (N, C, R, 128) layout. Returns (b_n, t_rows, grid)."""
    lane_row_bytes = 128 * itemsize
    cap = max(sub, (_MAX_BLOCK_BYTES // (C * lane_row_bytes)) // sub * sub)

    # Minimum row-chunks for the VMEM budget, then add chunks (if the row axis
    # allows) until the grid has enough steps to pipeline / shard across TCs.
    chunks = _cdiv(R, cap)
    while N * chunks < _MIN_GRID_STEPS and chunks < max(1, R // sub):
        chunks += 1

    if chunks <= 1:
        t_rows, grid_s = R, 1
    else:
        t_rows = min(cap, max(sub, _round_up(_cdiv(R, chunks), sub)))
        grid_s = _cdiv(R, t_rows)

    # Fold batch only when one row-chunk covers the image, and never so far
    # that the total grid collapses below the step target.
    b_n = 1
    if grid_s == 1 and N > 1:
        max_bn = max(1, _MAX_BLOCK_BYTES // (C * _round_up(R, sub) * lane_row_bytes))
        max_bn = min(max_bn, max(1, N // min(N, _MIN_GRID_STEPS)))
        for d in range(min(N, max_bn), 0, -1):
            if N % d == 0:
                b_n = d
                break

    return b_n, t_rows, (N // b_n, grid_s)


def _choose_tiling_flat(N, C, S, itemsize, sub):
    """Tiling for the (N, C, S) fallback (C on sublanes). Returns (b_n, t_s, grid)."""
    c_pad = _round_up(C, sub)  # real VMEM sublane footprint of the class axis
    cap = max(128, (_MAX_BLOCK_BYTES // (c_pad * itemsize)) // 128 * 128)

    chunks = _cdiv(S, cap)
    while N * chunks < _MIN_GRID_STEPS and chunks < max(1, S // 128):
        chunks += 1

    if chunks <= 1:
        # Single ragged block covering all of S (no jnp.pad; OOB lanes dropped).
        t_s, grid_s = _round_up(S, 128), 1
    else:
        t_s = min(cap, max(128, _round_up(_cdiv(S, chunks), 128)))
        grid_s = _cdiv(S, t_s)

    b_n = 1
    if grid_s == 1 and N > 1:
        max_bn = max(1, _MAX_BLOCK_BYTES // (c_pad * t_s * itemsize))
        max_bn = min(max_bn, max(1, N // min(N, _MIN_GRID_STEPS)))
        for d in range(min(N, max_bn), 0, -1):
            if N % d == 0:
                b_n = d
                break

    return b_n, t_s, (N // b_n, grid_s)


# ----------------------------- launch -------------------------------------- #

def _prep(backbone_output):
    """Free reshape of the logits + tiling decision.

    Returns (x, block_shape, index_map, grid, block_vmem_bytes)."""
    N, C, H, W = backbone_output.shape
    S = H * W
    itemsize = backbone_output.dtype.itemsize
    sub = _sublane_pack(itemsize)

    if S % 128 == 0:
        # Dense layout: spatial on sublanes+lanes, class axis leading.
        R = S // 128
        x = backbone_output.reshape(N, C, R, 128)
        b_n, t_rows, grid = _choose_tiling_rows(N, C, R, itemsize, sub)
        block_shape = (b_n, C, t_rows, 128)
        index_map = lambda n, s: (n, 0, s, 0)
        block_bytes = b_n * C * _round_up(t_rows, sub) * 128 * itemsize
    else:
        # Fallback: C on sublanes; ragged last lane block, no pad / no slice.
        x = backbone_output.reshape(N, C, S)
        b_n, t_s, grid = _choose_tiling_flat(N, C, S, itemsize, sub)
        block_shape = (b_n, C, t_s)
        index_map = lambda n, s: (n, 0, s)
        block_bytes = b_n * _round_up(C, sub) * t_s * itemsize

    return x, block_shape, index_map, grid, block_bytes


def _launch(kernel, x, n_out, block_shape, index_map, grid, block_vmem_bytes):
    spec = pl.BlockSpec(block_shape, index_map)
    out_sds = jax.ShapeDtypeStruct(x.shape, x.dtype)
    out_shape = out_sds if n_out == 1 else tuple([out_sds] * n_out)
    out_specs = spec if n_out == 1 else tuple([spec] * n_out)

    # (1 input + n_out outputs), double-buffered, real padded block sizes,
    # plus headroom. Clamped to stay under v7x's 64 MiB per-TC VMEM.
    vmem_limit = int((1 + n_out) * 2 * block_vmem_bytes + (8 << 20))
    vmem_limit = max(16 << 20, min(vmem_limit, 56 << 20))

    return pl.pallas_call(
        kernel,
        out_shape=out_shape,
        grid_spec=pltpu.PrefetchScalarGridSpec(
            num_scalar_prefetch=0,
            grid=grid,
            in_specs=[spec],
            out_specs=out_specs,
        ),
        compiler_params=pltpu.CompilerParams(
            dimension_semantics=("parallel", "parallel"),
            vmem_limit_bytes=vmem_limit,
        ),
    )(x)


# ----------------------------- public API ---------------------------------- #

def tmsu_head(backbone_output: jax.Array):
    """backbone_output: (N, C, H, W) logits.

    Returns (evidence, alpha, backbone_pred), each (N, C, H, W), matching the
    TMSU forward-pass intermediates. All three are produced by one fused
    pallas_call (4 HBM passes total)."""
    N, C, H, W = backbone_output.shape
    x, block_shape, index_map, grid, bb = _prep(backbone_output)
    ev, alpha, pred = _launch(_tmsu_head_kernel, x, 3, block_shape, index_map, grid, bb)
    reshape = lambda a: a.reshape(N, C, H, W)  # metadata-only reshape
    return reshape(ev), reshape(alpha), reshape(pred)


def tmsu_forward_eval(backbone_output: jax.Array):
    """TMSU.forward(..., mode != 'train') returns evidence only."""
    N, C, H, W = backbone_output.shape
    x, block_shape, index_map, grid, bb = _prep(backbone_output)
    ev = _launch(_tmsu_evidence_kernel, x, 1, block_shape, index_map, grid, bb)
    return ev.reshape(N, C, H, W)


if __name__ == "__main__":
    key = jax.random.PRNGKey(0)
    # Small shapes consistent with the module: batch=2, num_classes=4, 16x16.
    N, C, H, W = 2, 4, 16, 16
    logits = jax.random.normal(key, (N, C, H, W), dtype=jnp.float32) * 3.0

    evidence, alpha, pred = tmsu_head(logits)
    jax.block_until_ready((evidence, alpha, pred))

    # Reference check in plain JAX.
    ref_ev = jax.nn.softplus(logits)
    ref_alpha = ref_ev + 1.0
    ref_pred = jax.nn.softmax(logits, axis=1)

    assert jnp.allclose(evidence, ref_ev, atol=1e-5, rtol=1e-5)
    assert jnp.allclose(alpha, ref_alpha, atol=1e-5, rtol=1e-5)
    # pred uses the EUP approximate reciprocal -> relaxed tolerance.
    assert jnp.allclose(pred, ref_pred, atol=1e-2, rtol=1e-2)

    # Eval-mode forward (returns evidence only, like TMSU.forward mode='val').
    ev_only = tmsu_forward_eval(logits)
    jax.block_until_ready(ev_only)
    assert jnp.allclose(ev_only, ref_ev, atol=1e-5, rtol=1e-5)

    # Multi-step dense path (S % 128 == 0, several row chunks, N=1).
    logits3 = jax.random.normal(jax.random.PRNGKey(2), (1, 4, 64, 64), jnp.float32)
    ev3, al3, pr3 = tmsu_head(logits3)
    jax.block_until_ready((ev3, al3, pr3))
    assert jnp.allclose(ev3, jax.nn.softplus(logits3), atol=1e-5, rtol=1e-5)
    assert jnp.allclose(al3, jax.nn.softplus(logits3) + 1.0, atol=1e-5, rtol=1e-5)
    assert jnp.allclose(pr3, jax.nn.softmax(logits3, axis=1), atol=1e-2, rtol=1e-2)

    # Non-128-aligned spatial size exercises the flat fallback (no pad/slice).
    logits2 = jax.random.normal(jax.random.PRNGKey(1), (2, 4, 30, 30), jnp.float32)
    ev2, al2, pr2 = tmsu_head(logits2)
    jax.block_until_ready((ev2, al2, pr2))
    assert jnp.allclose(ev2, jax.nn.softplus(logits2), atol=1e-5, rtol=1e-5)
    assert jnp.allclose(al2, jax.nn.softplus(logits2) + 1.0, atol=1e-5, rtol=1e-5)
    assert jnp.allclose(pr2, jax.nn.softmax(logits2, axis=1), atol=1e-2, rtol=1e-2)

    print("KERNEL_OK")
</pallas_src>

<mosaic_0001>
module attributes {stable_mosaic.version = 11 : i64} {
  func.func @_tmsu_head_kernel(%arg0: i32, %arg1: i32, %arg2: memref<1x4x2x128xf32, #tpu.memory_space<vmem>>, %arg3: memref<1x4x2x128xf32, #tpu.memory_space<vmem>>, %arg4: memref<1x4x2x128xf32, #tpu.memory_space<vmem>>, %arg5: memref<1x4x2x128xf32, #tpu.memory_space<vmem>>) attributes {dimension_semantics = [#tpu.dimension_semantics<parallel>, #tpu.dimension_semantics<parallel>], iteration_bounds = array<i64: 2, 1>, scalar_prefetch = 0 : i64, scratch_operands = 0 : i64, tpu.core_type = #tpu.core_type<tc>, window_params = [{transform_indices = @transform_0, window_bounds = array<i64: 1, 4, 2, 128>}, {transform_indices = @transform_1, window_bounds = array<i64: 1, 4, 2, 128>}, {transform_indices = @transform_2, window_bounds = array<i64: 1, 4, 2, 128>}, {transform_indices = @transform_3, window_bounds = array<i64: 1, 4, 2, 128>}]} {
    %c0 = arith.constant 0 : index
    %c0_0 = arith.constant 0 : index
    %c0_1 = arith.constant 0 : index
    %c0_2 = arith.constant 0 : index
    %0 = vector.load %arg2[%c0, %c0_0, %c0_1, %c0_2] : memref<1x4x2x128xf32, #tpu.memory_space<vmem>>, vector<1x4x2x128xf32>
    %cst = arith.constant 0.000000e+00 : f32
    %1 = vector.broadcast %cst : f32 to vector<1x4x2x128xf32>
    %2 = arith.maximumf %0, %1 : vector<1x4x2x128xf32>
    %3 = math.absf %0 : vector<1x4x2x128xf32>
    %cst_3 = arith.constant 0.000000e+00 : f32
    %4 = vector.broadcast %cst_3 : f32 to vector<1x4x2x128xf32>
    %5 = arith.subf %4, %3 : vector<1x4x2x128xf32>
    %6 = math.exp %5 : vector<1x4x2x128xf32>
    %7 = math.log1p %6 : vector<1x4x2x128xf32>
    %8 = arith.addf %2, %7 : vector<1x4x2x128xf32>
    %c0_4 = arith.constant 0 : index
    %c0_5 = arith.constant 0 : index
    %c0_6 = arith.constant 0 : index
    %c0_7 = arith.constant 0 : index
    %9 = vector.load %arg3[%c0_4, %c0_5, %c0_6, %c0_7] : memref<1x4x2x128xf32, #tpu.memory_space<vmem>>, vector<1x4x2x128xf32>
    tpu.vector_store %arg3[%c0_4, %c0_5, %c0_6, %c0_7], %8 {strides = array<i32>} : memref<1x4x2x128xf32, #tpu.memory_space<vmem>>, vector<1x4x2x128xf32>,
    %cst_8 = arith.constant 1.000000e+00 : f32
    %10 = vector.broadcast %cst_8 : f32 to vector<1x4x2x128xf32>
    %11 = arith.addf %8, %10 : vector<1x4x2x128xf32>
    %c0_9 = arith.constant 0 : index
    %c0_10 = arith.constant 0 : index
    %c0_11 = arith.constant 0 : index
    %c0_12 = arith.constant 0 : index
    %12 = vector.load %arg4[%c0_9, %c0_10, %c0_11, %c0_12] : memref<1x4x2x128xf32, #tpu.memory_space<vmem>>, vector<1x4x2x128xf32>
    tpu.vector_store %arg4[%c0_9, %c0_10, %c0_11, %c0_12], %11 {strides = array<i32>} : memref<1x4x2x128xf32, #tpu.memory_space<vmem>>, vector<1x4x2x128xf32>,
    %cst_13 = arith.constant dense<0xFF800000> : vector<1x2x128xf32>
    %13 = vector.multi_reduction <maximumf>, %0, %cst_13 [1] : vector<1x4x2x128xf32> to vector<1x2x128xf32>
    %14 = vector.shape_cast %13 : vector<1x2x128xf32> to vector<1x1x2x128xf32>
    %15 = vector.broadcast %14 : vector<1x1x2x128xf32> to vector<1x4x2x128xf32>
    %16 = arith.subf %0, %15 : vector<1x4x2x128xf32>
    %17 = math.exp %16 : vector<1x4x2x128xf32>
    %cst_14 = arith.constant dense<0.000000e+00> : vector<1x2x128xf32>
    %18 = vector.multi_reduction <add>, %17, %cst_14 [1] : vector<1x4x2x128xf32> to vector<1x2x128xf32>
    %19 = vector.shape_cast %18 : vector<1x2x128xf32> to vector<1x1x2x128xf32>
    %20 = tpu.reciprocal %19 {approx = true} : vector<1x1x2x128xf32> -> vector<1x1x2x128xf32>
    %21 = vector.broadcast %20 : vector<1x1x2x128xf32> to vector<1x4x2x128xf32>
    %22 = arith.mulf %17, %21 : vector<1x4x2x128xf32>
    %c0_15 = arith.constant 0 : index
    %c0_16 = arith.constant 0 : index
    %c0_17 = arith.constant 0 : index
    %c0_18 = arith.constant 0 : index
    %23 = vector.load %arg5[%c0_15, %c0_16, %c0_17, %c0_18] : memref<1x4x2x128xf32, #tpu.memory_space<vmem>>, vector<1x4x2x128xf32>
    tpu.vector_store %arg5[%c0_15, %c0_16, %c0_17, %c0_18], %22 {strides = array<i32>} : memref<1x4x2x128xf32, #tpu.memory_space<vmem>>, vector<1x4x2x128xf32>,
    return
  }
  func.func @transform_0(%arg0: i32, %arg1: i32) -> (i32, i32, i32, i32) {
    %c0_i32 = arith.constant 0 : i32
    %c0_i32_0 = arith.constant 0 : i32
    %c0_i32_1 = arith.constant 0 : i32
    return %arg0, %c0_i32, %arg1, %c0_i32_0 : i32, i32, i32, i32
  }
  func.func @transform_1(%arg0: i32, %arg1: i32) -> (i32, i32, i32, i32) {
    %c0_i32 = arith.constant 0 : i32
    %c0_i32_0 = arith.constant 0 : i32
    %c0_i32_1 = arith.constant 0 : i32
    return %arg0, %c0_i32, %arg1, %c0_i32_0 : i32, i32, i32, i32
  }
  func.func @transform_2(%arg0: i32, %arg1: i32) -> (i32, i32, i32, i32) {
    %c0_i32 = arith.constant 0 : i32
    %c0_i32_0 = arith.constant 0 : i32
    %c0_i32_1 = arith.constant 0 : i32
    return %arg0, %c0_i32, %arg1, %c0_i32_0 : i32, i32, i32, i32
  }
  func.func @transform_3(%arg0: i32, %arg1: i32) -> (i32, i32, i32, i32) {
    %c0_i32 = arith.constant 0 : i32
    %c0_i32_0 = arith.constant 0 : i32
    %c0_i32_1 = arith.constant 0 : i32
    return %arg0, %c0_i32, %arg1, %c0_i32_0 : i32, i32, i32, i32
  }
}

</mosaic_0001>

<llo_original>
// kernel: tpu_custom_call.1
$region0: #{tpu_custom_call.1}
  #allocation0 [shape = 'u32[]', space=smem, size = 0x4, offset = 0x4, fixed_abs, tag = 'smem constant byte address 0x4 - core index']
  #allocation1 [shape = 'u32[72,128]{1,0:T(1,128)}', space=vmem, size = 0x9000, scoped, tag = 'internal scratch']
  %s0 = inlined_call_operand.hbm [shape: f32[2,4,2,128], index: 0, kind: input, shape index: {}]
  %s1 = inlined_call_operand.hbm [shape: f32[2,4,2,128], index: 1, kind: output, shape index: {0}]
  %s2 = inlined_call_operand.hbm [shape: f32[2,4,2,128], index: 2, kind: output, shape index: {1}]
  %s3 = inlined_call_operand.hbm [shape: f32[2,4,2,128], index: 3, kind: output, shape index: {2}]
  %4 = xla_tuple %s1, %s2, %s3
  %s5 = sld [smem:[#allocation0]]
  $region57: #{tpu_custom_call.1} parent=0
    _
  %s7 = ssub.s32 1, %s5
  %s8 = scalar_select 0, %s7, %s5
  $region1: #{tpu_custom_call.1} parent=0
    #allocation2 [shape = 'u8[8192]{0}', space=vmem, size = 0x2000, scoped, tag = 'input window, operand 0']
    #allocation3 [shape = 's32[2]{0}', space=sflag, size = 0x8, scoped, tag = 'scoped memory for tpu_custom_call.1']
    #allocation4 [shape = 's32[2]{0}', space=sflag, size = 0x8, scoped, tag = 'scoped memory for tpu_custom_call.1']
    #allocation5 [shape = 'u8[8192]{0}', space=vmem, size = 0x2000, scoped, tag = 'output window, operand 0']
    #allocation6 [shape = 'u8[8192]{0}', space=vmem, size = 0x2000, scoped, tag = 'output window, operand 1']
    #allocation7 [shape = 's32[2]{0}', space=sflag, size = 0x8, scoped, tag = 'scoped memory for tpu_custom_call.1']
    #allocation8 [shape = 'u8[8192]{0}', space=vmem, size = 0x2000, scoped, tag = 'output window, operand 2']
    %9 = vsyncpa [#allocation3], 0
    %s10 = scalar_lea.sflag [#allocation3], 1
    %11 = vsyncpa %s10, 0
    %12 = vsyncpa [#allocation4], 0
    %s13 = scalar_lea.sflag [#allocation4], 1
    %14 = vsyncpa %s13, 0
    %15 = vsyncpa [#allocation7], 0
    %s16 = scalar_lea.sflag [#allocation7], 1
    %17 = vsyncpa %s16, 0
    loop: start=0, step=1, limit=4
    $region2: #{tpu_custom_call.1} parent=1 // loop_pre_header
      _
    $region3: #{tpu_custom_call.1} parent=1 // loop_header
      %s19 = sphi 0, %s23
      %p20 = scmp.ge.s32.totalorder %s19, 4
      %s26 = sphi 0, %s38
      %s27 = sphi 0, %s34
      %s28 = sphi 0, %s26
      %s29 = sphi 0, %s27
      %s30 = sphi 0, %s28
      %s31 = sphi 0, %s29
      %s43 = sphi 0, %s45
      %s46 = sphi 0, %s43
      %s47 = sphi 0, %s46
      %s63 = sphi 0, %s47
      %s71 = sphi 0, %s73
      %s74 = sphi 0, %s71
      %s75 = sphi 0, %s74
      %s91 = sphi 0, %s75
      %s99 = sphi 0, %s101
      %s102 = sphi 0, %s99
      %s103 = sphi 0, %s102
      %s119 = sphi 0, %s103
      %s127 = sphi 0, %s129
      %s130 = sphi 0, %s127
      %s131 = sphi 0, %s130
      %s147 = sphi 0, %s131
    $region4: #{tpu_custom_call.1} parent=1 // loop_header_branch
      %22 = sbr.rel (%p20) target = $region8
    $region5: #{tpu_custom_call.1} parent=1 // loop_body
      %s24 = ssub.s32 %s19, 1
      %s25 = ssub.s32 %s19, 2
      %s32 = sadd.s32 1, %s27
      %p33 = scmp.ge.s32.totalorder %s32, 1
      %s34 = scalar_select %p33, 0, %s32
      %s35 = sadd.s32 1, %s26
      %s36 = scalar_select %p33, %s35, %s26
      %p37 = scmp.ge.s32.totalorder %s36, 2
      %s38 = scalar_select %p37, 0, %s36
      %s39 = ssub.s32 %s26, %s38
      %s40 = ssub.s32 %s27, %s34
      %s41 = sor.u32 %s39, %s40
      %p42 = scmp.eq.s32.totalorder %s41, 0
      %s44 = sadd.s32 %s43, 1
      %s45 = scalar_select %p42, %s43, %s44
      %p48 = pneg %p42
      %p49 = scmp.eq.s32.totalorder %s19, 1
      %p50 = por %p48, %p49
      %p51 = scmp.ne.s32.totalorder %s43, %s46
      %p52 = scmp.eq.s32.totalorder %s19, 0
      %p53 = por %p51, %p52
      %p54 = scmp.ne.s32.totalorder %s43, %s46
      %p55 = scmp.eq.s32.totalorder %s24, 1
      %p56 = por %p54, %p55
      %p57 = scmp.ne.s32.totalorder %s46, %s47
      %p58 = scmp.eq.s32.totalorder %s24, 0
      %p59 = por %p57, %p58
      %p60 = scmp.ne.s32.totalorder %s46, %s47
      %p61 = scmp.eq.s32.totalorder %s25, 1
      %p62 = por %p60, %p61
      %p64 = scmp.ne.s32.totalorder %s47, %s63
      %p65 = scmp.eq.s32.totalorder %s25, 0
      %p66 = por %p64, %p65
      %s67 = ssub.s32 %s26, %s38
      %s68 = ssub.s32 %s27, %s34
      %s69 = sor.u32 %s67, %s68
      %p70 = scmp.eq.s32.totalorder %s69, 0
      %s72 = sadd.s32 %s71, 1
      %s73 = scalar_select %p70, %s71, %s72
      %p76 = pneg %p70
      %p77 = scmp.eq.s32.totalorder %s19, 1
      %p78 = por %p76, %p77
      %p79 = scmp.ne.s32.totalorder %s71, %s74
      %p80 = scmp.eq.s32.totalorder %s19, 0
      %p81 = por %p79, %p80
      %p82 = scmp.ne.s32.totalorder %s71, %s74
      %p83 = scmp.eq.s32.totalorder %s24, 1
      %p84 = por %p82, %p83
      %p85 = scmp.ne.s32.totalorder %s74, %s75
      %p86 = scmp.eq.s32.totalorder %s24, 0
      %p87 = por %p85, %p86
      %p88 = scmp.ne.s32.totalorder %s74, %s75
      %p89 = scmp.eq.s32.totalorder %s25, 1
      %p90 = por %p88, %p89
      %p92 = scmp.ne.s32.totalorder %s75, %s91
      %p93 = scmp.eq.s32.totalorder %s25, 0
      %p94 = por %p92, %p93
      %s95 = ssub.s32 %s26, %s38
      %s96 = ssub.s32 %s27, %s34
      %s97 = sor.u32 %s95, %s96
      %p98 = scmp.eq.s32.totalorder %s97, 0
      %s100 = sadd.s32 %s99, 1
      %s101 = scalar_select %p98, %s99, %s100
      %p104 = pneg %p98
      %p105 = scmp.eq.s32.totalorder %s19, 1
      %p106 = por %p104, %p105
      %p107 = scmp.ne.s32.totalorder %s99, %s102
      %p108 = scmp.eq.s32.totalorder %s19, 0
      %p109 = por %p107, %p108
      %p110 = scmp.ne.s32.totalorder %s99, %s102
      %p111 = scmp.eq.s32.totalorder %s24, 1
      %p112 = por %p110, %p111
      %p113 = scmp.ne.s32.totalorder %s102, %s103
      %p114 = scmp.eq.s32.totalorder %s24, 0
      %p115 = por %p113, %p114
      %p116 = scmp.ne.s32.totalorder %s102, %s103
      %p117 = scmp.eq.s32.totalorder %s25, 1
      %p118 = por %p116, %p117
      %p120 = scmp.ne.s32.totalorder %s103, %s119
      %p121 = scmp.eq.s32.totalorder %s25, 0
      %p122 = por %p120, %p121
      %s123 = ssub.s32 %s26, %s38
      %s124 = ssub.s32 %s27, %s34
      %s125 = sor.u32 %s123, %s124
      %p126 = scmp.eq.s32.totalorder %s125, 0
      %s128 = sadd.s32 %s127, 1
      %s129 = scalar_select %p126, %s127, %s128
      %p132 = pneg %p126
      %p133 = scmp.eq.s32.totalorder %s19, 1
      %p134 = por %p132, %p133
      %p135 = scmp.ne.s32.totalorder %s127, %s130
      %p136 = scmp.eq.s32.totalorder %s19, 0
      %p137 = por %p135, %p136
      %p138 = scmp.ne.s32.totalorder %s127, %s130
      %p139 = scmp.eq.s32.totalorder %s24, 1
      %p140 = por %p138, %p139
      %p141 = scmp.ne.s32.totalorder %s130, %s131
      %p142 = scmp.eq.s32.totalorder %s24, 0
      %p143 = por %p141, %p142
      %p144 = scmp.ne.s32.totalorder %s130, %s131
      %p145 = scmp.eq.s32.totalorder %s25, 1
      %p146 = por %p144, %p145
      %p148 = scmp.ne.s32.totalorder %s131, %s147
      %p149 = scmp.eq.s32.totalorder %s25, 0
      %p150 = por %p148, %p149
      %p151 = scmp.le.s32.totalorder 1, %s19
      %p152 = scmp.lt.s32.totalorder %s19, 3
      %p153 = pnand %p151, %p152
      %p154 = pneg %p153
      // Predicated region
      $region9: #{tpu_custom_call.1} parent=5 // pred_check
        _
      $region10: #{tpu_custom_call.1} parent=5 // pred_check_branch
        %156 = sbr.rel (%p153) target = $region12
      $region11: #{tpu_custom_call.1} parent=5 // pred_region
        %s157 = ssub.s32 %s19, 1
      $region12: #{tpu_custom_call.1} parent=5 // pred_fallthru
        _
      %p158 = scmp.lt.s32.totalorder %s19, 2
      // Predicated region
      $region13: #{tpu_custom_call.1} parent=5 // pred_check
        %p159 = pneg %p158
      $region14: #{tpu_custom_call.1} parent=5 // pred_check_branch
        %161 = sbr.rel (%p159) target = $region16
      $region15: #{tpu_custom_call.1} parent=5 // pred_region
        // Predicated region
        $region17: #{tpu_custom_call.1} parent=15 // pred_check
          %p162 = pneg %p53
        $region18: #{tpu_custom_call.1} parent=15 // pred_check_branch
          %164 = sbr.rel (%p162) target = $region20
        $region19: #{tpu_custom_call.1} parent=15 // pred_region
          %s165 = sand.u32 %s43, 1
          %s166 = scalar_lea.sflag [#allocation3], %s165
          %s167 = sand.u32 %s43, 1
          %s168 = smul.addr %s167, 8
          %s169 = scalar_lea.vmem [#allocation2], %s168
          %171 = vsyncadd %s166, 0
          %s172 = smul.addr %s26, 4
          %s173 = sadd.s32 %s27, %s172
          %s174 = smul.addr %s173, 2
          %s175 = scalar_lea.hbm %s0, %s174
          %s176 = sshll.u32 %s175, 4
          %s177 = int_to_ptr.hbm [resolvable:$true] %s176
          %s178 = sshll.u32 %s169, 4
          %s179 = int_to_ptr.vmem [resolvable:$true] %s178
          %184 = dma.hbm_to_vmem [thread:$0]  %s177, 128, %s179, %s166, 32, 32, 2
        $region20: #{tpu_custom_call.1} parent=15 // pred_fallthru
          _
      $region16: #{tpu_custom_call.1} parent=5 // pred_fallthru
        _
      %p185 = scmp.le.s32.totalorder 1, %s19
      %p186 = scmp.lt.s32.totalorder %s19, 3
      %p187 = pnand %p185, %p186
      %p188 = pneg %p187
      // Predicated region
      $region21: #{tpu_custom_call.1} parent=5 // pred_check
        _
      $region22: #{tpu_custom_call.1} parent=5 // pred_check_branch
        %190 = sbr.rel (%p187) target = $region24
      $region23: #{tpu_custom_call.1} parent=5 // pred_region
        %s191 = ssub.s32 %s19, 1
        %s192 = sand.u32 %s46, 1
        %s193 = scalar_lea.sflag [#allocation3], %s192
        %s194 = sand.u32 %s46, 1
        %s195 = smul.addr %s194, 8
        %s196 = scalar_lea.vmem [#allocation2], %s195
        // Predicated region
        $region25: #{tpu_custom_call.1} parent=23 // pred_check
          %p197 = pneg %p59
        $region26: #{tpu_custom_call.1} parent=23 // pred_check_branch
          %199 = sbr.rel (%p197) target = $region28
        $region27: #{tpu_custom_call.1} parent=23 // pred_region
          %201 = dma.done %s193, 128
        $region28: #{tpu_custom_call.1} parent=23 // pred_fallthru
          _
        %s202 = sand.u32 %s46, 1
        %s203 = scalar_lea.sflag [#allocation3], %s202
        %s204 = sand.u32 %s46, 1
        %s205 = smul.addr %s204, 8
        %s206 = scalar_lea.vmem [#allocation2], %s205
        %p207 = pneg %p59
        %p208 = pneg %p56
        %p209 = pneg %p87
        %p210 = pneg %p84
        %s211 = sand.u32 %s74, 1
        %s212 = scalar_lea.sflag [#allocation4], %s211
        %s213 = sand.u32 %s74, 1
        %s214 = smul.addr %s213, 8
        %s215 = scalar_lea.vmem [#allocation5], %s214
        %p216 = pneg %p115
        %p217 = pneg %p112
        %s218 = sand.u32 %s24, 1
        %s219 = scalar_lea.sflag [#allocation7], %s218
        %s220 = sand.u32 %s102, 1
        %s221 = smul.addr %s220, 8
        %s222 = scalar_lea.vmem [#allocation6], %s221
        %p223 = pneg %p143
        %p224 = pneg %p140
        %s225 = sand.u32 %s24, 1
        %s226 = scalar_lea.sflag [#allocation7], %s225
        %s227 = sand.u32 %s130, 1
        %s228 = smul.addr %s227, 8
        %s229 = scalar_lea.vmem [#allocation8], %s228
        %v230 = vld [vmem:[%s196] sm:$0x3]
        %v231 = vld [vmem:[%s196 + $0x2] sm:$0x3]
        %v232 = vld [vmem:[%s196 + $0x4] sm:$0x3]
        %v233 = vld [vmem:[%s196 + $0x6] sm:$0x3]
        %v234 = vmax.f32 %v230, 0.0
        %v235 = vmax.f32 %v231, 0.0
        %v236 = vmax.f32 %v232, 0.0
        %v237 = vmax.f32 %v233, 0.0
        %v238 = vand.u32 2147483647, %v230
        %v239 = vand.u32 2147483647, %v231
        %v240 = vand.u32 2147483647, %v232
        %v241 = vand.u32 2147483647, %v233
        %v242 = vsub.f32 0.0, %v238
        %v243 = vsub.f32 0.0, %v239
        %v244 = vsub.f32 0.0, %v240
        %v245 = vsub.f32 0.0, %v241
        %v246 = vmul.f32 %v242, 1.442695
        %v247 = vpow.pop %v246
        %v248 = vmul.f32 %v243, 1.442695
        %v249 = vpow.pop %v248
        %v250 = vmul.f32 %v244, 1.442695
        %v251 = vpow.pop %v250
        %v252 = vmul.f32 %v245, 1.442695
        %v253 = vpow.pop %v252
        %v254 = vadd.f32 %v247, 1.0
        %v255 = vlog2.pop %v254
        %v256 = vmul.f32 %v255, 0.6931472
        %v257 = vmul.f32 -0.5, %v247
        %v258 = vadd.f32 %v257, 1.0
        %v259 = vmul.f32 %v258, %v247
        %v260 = vand.u32 2147483647, %v247
        %vm261 = vcmp.lt.f32.partialorder %v260, 0.0004427343
        %v262 = vsel %vm261, %v259, %v256
        %v263 = vadd.f32 %v249, 1.0
        %v264 = vlog2.pop %v263
        %v265 = vmul.f32 %v264, 0.6931472
        %v266 = vmul.f32 -0.5, %v249
        %v267 = vadd.f32 %v266, 1.0
        %v268 = vmul.f32 %v267, %v249
        %v269 = vand.u32 2147483647, %v249
        %vm270 = vcmp.lt.f32.partialorder %v269, 0.0004427343
        %v271 = vsel %vm270, %v268, %v265
        %v272 = vadd.f32 %v251, 1.0
        %v273 = vlog2.pop %v272
        %v274 = vmul.f32 %v273, 0.6931472
        %v275 = vmul.f32 -0.5, %v251
        %v276 = vadd.f32 %v275, 1.0
        %v277 = vmul.f32 %v276, %v251
        %v278 = vand.u32 2147483647, %v251
        %vm279 = vcmp.lt.f32.partialorder %v278, 0.0004427343
        %v280 = vsel %vm279, %v277, %v274
        %v281 = vadd.f32 %v253, 1.0
        %v282 = vlog2.pop %v281
        %v283 = vmul.f32 %v282, 0.6931472
        %v284 = vmul.f32 -0.5, %v253
        %v285 = vadd.f32 %v284, 1.0
        %v286 = vmul.f32 %v285, %v253
        %v287 = vand.u32 2147483647, %v253
        %vm288 = vcmp.lt.f32.partialorder %v287, 0.0004427343
        %v289 = vsel %vm288, %v286, %v283
        %v290 = vadd.f32 %v234, %v262
        %v291 = vadd.f32 %v235, %v271
        %v292 = vadd.f32 %v236, %v280
        %v293 = vadd.f32 %v237, %v289
        %294 = vst [vmem:[%s215] sm:$0x3] %v290
        %295 = vst [vmem:[%s215 + $0x2] sm:$0x3] %v291
        %296 = vst [vmem:[%s215 + $0x4] sm:$0x3] %v292
        %297 = vst [vmem:[%s215 + $0x6] sm:$0x3] %v293
        %v298 = vadd.f32 %v290, 1.0
        %v299 = vadd.f32 %v291, 1.0
        %v300 = vadd.f32 %v292, 1.0
        %v301 = vadd.f32 %v293, 1.0
        %302 = vst [vmem:[%s222] sm:$0x3] %v298
        %303 = vst [vmem:[%s222 + $0x2] sm:$0x3] %v299
        %304 = vst [vmem:[%s222 + $0x4] sm:$0x3] %v300
        %305 = vst [vmem:[%s222 + $0x6] sm:$0x3] %v301
        %vm306 = vcmask 1041408
        %v307 = vsel %vm306, %v230, -inf
        %v308 = vsel %vm306, %v231, -inf
        %v309 = vsel %vm306, %v232, -inf
        %v310 = vsel %vm306, %v233, -inf
        %v311 = vmax.f32 %v307, %v308
        %v312 = vmax.f32 %v309, %v310
        %v313 = vmax.f32 %v311, %v312
        %v314 = vsub.f32 %v230, %v313
        %v315 = vsub.f32 %v231, %v313
        %v316 = vsub.f32 %v232, %v313
        %v317 = vsub.f32 %v233, %v313
        %v318 = vmul.f32 %v314, 1.442695
        %v319 = vpow.pop %v318
        %v320 = vmul.f32 %v315, 1.442695
        %v321 = vpow.pop %v320
        %v322 = vmul.f32 %v316, 1.442695
        %v323 = vpow.pop %v322
        %v324 = vmul.f32 %v317, 1.442695
        %v325 = vpow.pop %v324
        %v326 = vsel %vm306, %v319, 0.0
        %v327 = vsel %vm306, %v321, 0.0
        %v328 = vadd.f32 %v326, %v327
        %v329 = vsel %vm306, %v323, 0.0
        %v330 = vadd.f32 %v328, %v329
        %v331 = vsel %vm306, %v325, 0.0
        %v332 = vadd.f32 %v330, %v331
        %v333 = vrcp.pop %v332
        %v334 = vmul.f32 %v319, %v333
        %v335 = vmul.f32 %v321, %v333
        %v336 = vmul.f32 %v323, %v333
        %v337 = vmul.f32 %v325, %v333
        %338 = vst [vmem:[%s229] sm:$0x3] %v334
        %339 = vst [vmem:[%s229 + $0x2] sm:$0x3] %v335
        %340 = vst [vmem:[%s229 + $0x4] sm:$0x3] %v336
        %341 = vst [vmem:[%s229 + $0x6] sm:$0x3] %v337
        %s342 = sand.u32 %s74, 1
        %s343 = scalar_lea.sflag [#allocation4], %s342
        %s344 = sand.u32 %s74, 1
        %s345 = smul.addr %s344, 8
        %s346 = scalar_lea.vmem [#allocation5], %s345
        %s347 = sand.u32 %s24, 1
        %s348 = scalar_lea.sflag [#allocation7], %s347
        %s349 = sand.u32 %s102, 1
        %s350 = smul.addr %s349, 8
        %s351 = scalar_lea.vmem [#allocation6], %s350
        %s352 = sand.u32 %s24, 1
        %s353 = scalar_lea.sflag [#allocation7], %s352
        %s354 = sand.u32 %s130, 1
        %s355 = smul.addr %s354, 8
        %s356 = scalar_lea.vmem [#allocation8], %s355
        // Predicated region
        $region29: #{tpu_custom_call.1} parent=23 // pred_check
          %p357 = pneg %p84
        $region30: #{tpu_custom_call.1} parent=23 // pred_check_branch
          %359 = sbr.rel (%p357) target = $region32
        $region31: #{tpu_custom_call.1} parent=23 // pred_region
          %361 = vsyncadd %s343, 0
          %s362 = smul.addr %s28, 4
          %s363 = sadd.s32 %s29, %s362
          %s364 = smul.addr %s363, 2
          %s365 = scalar_lea.hbm %s1, %s364
          %s366 = sshll.u32 %s346, 4
          %s367 = int_to_ptr.vmem [resolvable:$true] %s366
          %s368 = sshll.u32 %s365, 4
          %s369 = int_to_ptr.hbm [resolvable:$true] %s368
          %374 = dma.vmem_to_hbm [thread:$0]  %s367, 128, %s369, %s343, 32, 32, 2
        $region32: #{tpu_custom_call.1} parent=23 // pred_fallthru
          _
        // Predicated region
        $region33: #{tpu_custom_call.1} parent=23 // pred_check
          %p375 = pneg %p112
        $region34: #{tpu_custom_call.1} parent=23 // pred_check_branch
          %377 = sbr.rel (%p375) target = $region36
        $region35: #{tpu_custom_call.1} parent=23 // pred_region
          %379 = vsyncadd %s348, 0
          %s380 = smul.addr %s28, 4
          %s381 = sadd.s32 %s29, %s380
          %s382 = smul.addr %s381, 2
          %s383 = scalar_lea.hbm %s2, %s382
          %s384 = sshll.u32 %s351, 4
          %s385 = int_to_ptr.vmem [resolvable:$true] %s384
          %s386 = sshll.u32 %s383, 4
          %s387 = int_to_ptr.hbm [resolvable:$true] %s386
          %392 = dma.vmem_to_hbm [thread:$0]  %s385, 128, %s387, %s348, 32, 32, 2
        $region36: #{tpu_custom_call.1} parent=23 // pred_fallthru
          _
        // Predicated region
        $region37: #{tpu_custom_call.1} parent=23 // pred_check
          %p393 = pneg %p140
        $region38: #{tpu_custom_call.1} parent=23 // pred_check_branch
          %395 = sbr.rel (%p393) target = $region40
        $region39: #{tpu_custom_call.1} parent=23 // pred_region
          %397 = vsyncadd %s353, 0
          %s398 = smul.addr %s28, 4
          %s399 = sadd.s32 %s29, %s398
          %s400 = smul.addr %s399, 2
          %s401 = scalar_lea.hbm %s3, %s400
          %s402 = sshll.u32 %s356, 4
          %s403 = int_to_ptr.vmem [resolvable:$true] %s402
          %s404 = sshll.u32 %s401, 4
          %s405 = int_to_ptr.hbm [resolvable:$true] %s404
          %410 = dma.vmem_to_hbm [thread:$0]  %s403, 128, %s405, %s353, 32, 32, 2
        $region40: #{tpu_custom_call.1} parent=23 // pred_fallthru
          _
      $region24: #{tpu_custom_call.1} parent=5 // pred_fallthru
        _
      %p411 = scmp.le.s32.totalorder 2, %s19
      // Predicated region
      $region41: #{tpu_custom_call.1} parent=5 // pred_check
        %p412 = pneg %p411
      $region42: #{tpu_custom_call.1} parent=5 // pred_check_branch
        %414 = sbr.rel (%p412) target = $region44
      $region43: #{tpu_custom_call.1} parent=5 // pred_region
        %s415 = ssub.s32 %s19, 2
        // Predicated region
        $region45: #{tpu_custom_call.1} parent=43 // pred_check
          %p416 = pneg %p90
        $region46: #{tpu_custom_call.1} parent=43 // pred_check_branch
          %418 = sbr.rel (%p416) target = $region48
        $region47: #{tpu_custom_call.1} parent=43 // pred_region
          %s419 = sand.u32 %s75, 1
          %s420 = scalar_lea.sflag [#allocation4], %s419
          %s421 = sand.u32 %s75, 1
          %s422 = smul.addr %s421, 8
          %s423 = scalar_lea.vmem [#allocation5], %s422
          %425 = dma.done %s420, 128
        $region48: #{tpu_custom_call.1} parent=43 // pred_fallthru
          _
        // Predicated region
        $region49: #{tpu_custom_call.1} parent=43 // pred_check
          %p426 = pneg %p118
        $region50: #{tpu_custom_call.1} parent=43 // pred_check_branch
          %428 = sbr.rel (%p426) target = $region52
        $region51: #{tpu_custom_call.1} parent=43 // pred_region
          %s429 = sand.u32 %s25, 1
          %s430 = scalar_lea.sflag [#allocation7], %s429
          %s431 = sand.u32 %s103, 1
          %s432 = smul.addr %s431, 8
          %s433 = scalar_lea.vmem [#allocation6], %s432
          %435 = dma.done %s430, 128
        $region52: #{tpu_custom_call.1} parent=43 // pred_fallthru
          _
        // Predicated region
        $region53: #{tpu_custom_call.1} parent=43 // pred_check
          %p436 = pneg %p146
        $region54: #{tpu_custom_call.1} parent=43 // pred_check_branch
          %438 = sbr.rel (%p436) target = $region56
        $region55: #{tpu_custom_call.1} parent=43 // pred_region
          %s439 = sand.u32 %s25, 1
          %s440 = scalar_lea.sflag [#allocation7], %s439
          %s441 = sand.u32 %s131, 1
          %s442 = smul.addr %s441, 8
          %s443 = scalar_lea.vmem [#allocation8], %s442
          %445 = dma.done %s440, 128
        $region56: #{tpu_custom_call.1} parent=43 // pred_fallthru
          _
      $region44: #{tpu_custom_call.1} parent=5 // pred_fallthru
        _
    $region6: #{tpu_custom_call.1} parent=1 // loop_footer
      %s23 = sadd.s32 1, %s19
    $region7: #{tpu_custom_call.1} parent=1 // loop_footer_branch
      %18 = sbr.rel target = $region3
    $region8: #{tpu_custom_call.1} parent=1 // loop_exit
      _
    %446 = vsyncpa [#allocation3], 1
    %s447 = scalar_lea.sflag [#allocation3], 1
    %448 = vsyncpa %s447, 1
    %449 = vsyncpa [#allocation4], 1
    %s450 = scalar_lea.sflag [#allocation4], 1
    %451 = vsyncpa %s450, 1
    %452 = vsyncpa [#allocation7], 1
    %s453 = scalar_lea.sflag [#allocation7], 1
    %454 = vsyncpa %s453, 1

</llo_original>
